<compile_context>
chip_gen: v7x
topology: tpu7x:2x2x1
jax: 0.10.0
libtpu: 0.0.40
codegen_flags: <defaults>
</compile_context>

<pallas_src>
import functools

import jax
import jax.numpy as jnp
from jax.experimental import pallas as pl
from jax.experimental.pallas import tpu as pltpu


# ---------------------------------------------------------------------------
# Kernel 1: global attention branch.
#   pooled = mean_T cat(x1, x2)   ;   g = (relu(pooled @ W1g + b1g)) @ W2g + b2g
# Grid: (num_t_tiles,) reduction over T with VMEM accumulators.
# ---------------------------------------------------------------------------
def _global_branch_kernel(x1_ref, x2_ref, w1a_ref, w1b_ref, b1_ref,
                          w2_ref, b2_ref, g_ref, acc1_ref, acc2_ref, *, inv_t):
    t = pl.program_id(0)

    @pl.when(t == 0)
    def _():
        acc1_ref[...] = jnp.zeros_like(acc1_ref)
        acc2_ref[...] = jnp.zeros_like(acc2_ref)

    # Per-tile channel sums (lane reduction): (B, C, Tt) -> (B, C).
    acc1_ref[...] += jnp.sum(x1_ref[...], axis=-1)
    acc2_ref[...] += jnp.sum(x2_ref[...], axis=-1)

    @pl.when(t == pl.num_programs(0) - 1)
    def _():
        pooled1 = acc1_ref[...] * inv_t                       # (B, C)
        pooled2 = acc2_ref[...] * inv_t                       # (B, C)
        h = jnp.dot(pooled1, w1a_ref[...], preferred_element_type=jnp.float32)
        h += jnp.dot(pooled2, w1b_ref[...], preferred_element_type=jnp.float32)
        h = jnp.maximum(h + b1_ref[...], 0.0)                 # (B, H)
        g = jnp.dot(h, w2_ref[...], preferred_element_type=jnp.float32)
        g_ref[...] = (g + b2_ref[...]).astype(g_ref.dtype)    # (B, C)


# ---------------------------------------------------------------------------
# Kernel 2: local attention + sigmoid gate + blend, per (batch, T-tile).
# ---------------------------------------------------------------------------
def _afm_fuse_kernel(x1_ref, x2_ref, g_ref, w1a_ref, w1b_ref, b1_ref,
                     w2_ref, b2_ref, o_ref):
    x1 = x1_ref[0]                                            # (C, Tt)
    x2 = x2_ref[0]                                            # (C, Tt)

    # Local attention, BN folded:  h = relu(W1a @ x1 + W1b @ x2 + b1)
    h = jnp.dot(w1a_ref[...], x1, preferred_element_type=jnp.float32)
    h += jnp.dot(w1b_ref[...], x2, preferred_element_type=jnp.float32)
    h = jnp.maximum(h + b1_ref[...], 0.0)                     # (H, Tt)
    y_local = jnp.dot(w2_ref[...], h, preferred_element_type=jnp.float32)
    y_local = y_local + b2_ref[...]                           # (C, Tt)

    s = jax.nn.sigmoid(y_local + g_ref[0])                    # + (C, 1) broadcast
    x1f = x1.astype(jnp.float32)
    x2f = x2.astype(jnp.float32)
    o_ref[0] = (x1f * s + x2f * (1.0 - s)).astype(o_ref.dtype)


# ---------------------------------------------------------------------------
# Parameter helpers
# ---------------------------------------------------------------------------
_BN_EPS = 1e-5


def _fold_bn(w, b, bn):
    """Fold eval-mode BatchNorm1d into the preceding 1x1 conv (scale + bias)."""
    scale = bn["g"] / jnp.sqrt(bn["v"] + _BN_EPS)
    return w * scale[:, None], (b - bn["m"]) * scale + bn["b"]


def init_params(key, planes, reduction_ratio=8):
    C = planes
    H = planes // reduction_ratio
    ks = jax.random.split(key, 12)

    def w(k, shape):
        return 0.1 * jax.random.normal(k, shape, dtype=jnp.float32)

    def bn(k, n):
        k1, k2, k3, k4 = jax.random.split(k, 4)
        return dict(g=1.0 + 0.1 * jax.random.normal(k1, (n,), jnp.float32),
                    b=0.1 * jax.random.normal(k2, (n,), jnp.float32),
                    m=0.1 * jax.random.normal(k3, (n,), jnp.float32),
                    v=0.5 + jax.random.uniform(k4, (n,), jnp.float32))

    return {
        "l_w1": w(ks[0], (H, 2 * C)), "l_b1": w(ks[1], (H,)), "l_bn1": bn(ks[2], H),
        "l_w2": w(ks[3], (C, H)),     "l_b2": w(ks[4], (C,)), "l_bn2": bn(ks[5], C),
        "g_w1": w(ks[6], (H, 2 * C)), "g_b1": w(ks[7], (H,)), "g_bn1": bn(ks[8], H),
        "g_w2": w(ks[9], (C, H)),     "g_b2": w(ks[10], (C,)), "g_bn2": bn(ks[11], C),
    }


# ---------------------------------------------------------------------------
# Wrapper
# ---------------------------------------------------------------------------
def afm_forward(x1, x2, params, *, t_tile=128):
    """x1, x2: (B, C, T) float32 -> (B, C, T) float32 (AFM forward, eval mode)."""
    B, C, T = x1.shape

    # Fold BN into the convs (trace-time, pure JAX on tiny weight tensors).
    w1l, b1l = _fold_bn(params["l_w1"], params["l_b1"], params["l_bn1"])
    w2l, b2l = _fold_bn(params["l_w2"], params["l_b2"], params["l_bn2"])
    w1g, b1g = _fold_bn(params["g_w1"], params["g_b1"], params["g_bn1"])
    w2g, b2g = _fold_bn(params["g_w2"], params["g_b2"], params["g_bn2"])
    H = w1l.shape[0]

    # Split the concat(2C) weights so kernels never materialize cat(x1, x2).
    w1la, w1lb = w1l[:, :C], w1l[:, C:]              # (H, C) each
    w1ga_t, w1gb_t = w1g[:, :C].T, w1g[:, C:].T      # (C, H) each
    w2g_t = w2g.T                                    # (H, C)

    # Lane-dense T tiles (multiple of 128); fall back to a single tile
    # when T is not divisible (small/demo shapes).
    tt = t_tile if (T % t_tile == 0) else T
    n_t = T // tt

    # --- Kernel 1: global branch (mean over T + bottleneck MLP) -> (B, C) ---
    g = pl.pallas_call(
        functools.partial(_global_branch_kernel, inv_t=1.0 / T),
        out_shape=jax.ShapeDtypeStruct((B, C), jnp.float32),
        grid_spec=pltpu.PrefetchScalarGridSpec(
            num_scalar_prefetch=0,
            grid=(n_t,),
            in_specs=[
                pl.BlockSpec((B, C, tt), lambda t: (0, 0, t)),
                pl.BlockSpec((B, C, tt), lambda t: (0, 0, t)),
                pl.BlockSpec((C, H), lambda t: (0, 0)),
                pl.BlockSpec((C, H), lambda t: (0, 0)),
                pl.BlockSpec((1, H), lambda t: (0, 0)),
                pl.BlockSpec((H, C), lambda t: (0, 0)),
                pl.BlockSpec((1, C), lambda t: (0, 0)),
            ],
            out_specs=pl.BlockSpec((B, C), lambda t: (0, 0)),
            scratch_shapes=[pltpu.VMEM((B, C), jnp.float32),
                            pltpu.VMEM((B, C), jnp.float32)],
        ),
        compiler_params=pltpu.CompilerParams(
            dimension_semantics=("arbitrary",)),
    )(x1, x2, w1ga_t, w1gb_t, b1g[None, :], w2g_t, b2g[None, :])

    g3 = g.reshape(B, C, 1)   # broadcast-ready (C, 1) per batch inside kernel 2

    # --- Kernel 2: local attention + gate + blend, (B, T) tiled -------------
    out = pl.pallas_call(
        _afm_fuse_kernel,
        out_shape=jax.ShapeDtypeStruct((B, C, T), x1.dtype),
        grid_spec=pltpu.PrefetchScalarGridSpec(
            num_scalar_prefetch=0,
            grid=(B, n_t),
            in_specs=[
                pl.BlockSpec((1, C, tt), lambda b, t: (b, 0, t)),
                pl.BlockSpec((1, C, tt), lambda b, t: (b, 0, t)),
                pl.BlockSpec((1, C, 1), lambda b, t: (b, 0, 0)),
                pl.BlockSpec((H, C), lambda b, t: (0, 0)),
                pl.BlockSpec((H, C), lambda b, t: (0, 0)),
                pl.BlockSpec((H, 1), lambda b, t: (0, 0)),
                pl.BlockSpec((C, H), lambda b, t: (0, 0)),
                pl.BlockSpec((C, 1), lambda b, t: (0, 0)),
            ],
            out_specs=pl.BlockSpec((1, C, tt), lambda b, t: (b, 0, t)),
        ),
        compiler_params=pltpu.CompilerParams(
            dimension_semantics=("parallel", "parallel")),
    )(x1, x2, g3, w1la, w1lb, b1l[:, None], w2l, b2l[:, None])
    return out


# ---------------------------------------------------------------------------
# Pure-JAX reference mirroring the PyTorch module (eval mode)
# ---------------------------------------------------------------------------
def afm_ref(x1, x2, params):
    x = jnp.concatenate([x1, x2], axis=1)                      # (B, 2C, T)

    def conv(y, w, b):
        return jnp.einsum("oi,bit->bot", w, y) + b[None, :, None]

    def bn(y, p):
        return ((y - p["m"][None, :, None])
                * (p["g"][None, :, None] / jnp.sqrt(p["v"][None, :, None] + _BN_EPS))
                + p["b"][None, :, None])

    h = jnp.maximum(bn(conv(x, params["l_w1"], params["l_b1"]), params["l_bn1"]), 0.0)
    x_local = bn(conv(h, params["l_w2"], params["l_b2"]), params["l_bn2"])

    xp = jnp.mean(x, axis=-1, keepdims=True)                   # (B, 2C, 1)
    hg = jnp.maximum(bn(conv(xp, params["g_w1"], params["g_b1"]), params["g_bn1"]), 0.0)
    x_global = bn(conv(hg, params["g_w2"], params["g_b2"]), params["g_bn2"])

    s = jax.nn.sigmoid(x_local + x_global)
    return x1 * s + x2 * (1.0 - s)


if __name__ == "__main__":
    key = jax.random.PRNGKey(0)
    k_p, k_x1, k_x2 = jax.random.split(key, 3)

    B, planes, T = 2, 32, 256          # planes -> C=32, hidden H=C/8=4
    params = init_params(k_p, planes, reduction_ratio=8)
    x1 = jax.random.normal(k_x1, (B, planes, T), dtype=jnp.float32)
    x2 = jax.random.normal(k_x2, (B, planes, T), dtype=jnp.float32)

    y = afm_forward(x1, x2, params)
    jax.block_until_ready(y)

    y_ref = afm_ref(x1, x2, params)
    assert y.shape == y_ref.shape, "shape mismatch vs reference"
    assert jnp.allclose(y, y_ref, atol=1e-4, rtol=1e-4), "mismatch vs reference"
    print("KERNEL_OK")
</pallas_src>

<mosaic_0001>
module attributes {stable_mosaic.version = 11 : i64} {
  func.func @_global_branch_kernel(%arg0: i32, %arg1: memref<2x32x128xf32, #tpu.memory_space<vmem>>, %arg2: memref<2x32x128xf32, #tpu.memory_space<vmem>>, %arg3: memref<32x4xf32, #tpu.memory_space<vmem>>, %arg4: memref<32x4xf32, #tpu.memory_space<vmem>>, %arg5: memref<1x4xf32, #tpu.memory_space<vmem>>, %arg6: memref<4x32xf32, #tpu.memory_space<vmem>>, %arg7: memref<1x32xf32, #tpu.memory_space<vmem>>, %arg8: memref<2x32xf32, #tpu.memory_space<vmem>>, %arg9: memref<2x32xf32, #tpu.memory_space<vmem>>, %arg10: memref<2x32xf32, #tpu.memory_space<vmem>>) attributes {dimension_semantics = [#tpu.dimension_semantics<arbitrary>], iteration_bounds = array<i64: 2>, scalar_prefetch = 0 : i64, scratch_operands = 2 : i64, tpu.core_type = #tpu.core_type<tc>, window_params = [{transform_indices = @transform_0, window_bounds = array<i64: 2, 32, 128>}, {transform_indices = @transform_1, window_bounds = array<i64: 2, 32, 128>}, {pipeline_mode = #tpu.pipeline_mode<synchronous>, transform_indices = @transform_2, window_bounds = array<i64: 32, 4>}, {pipeline_mode = #tpu.pipeline_mode<synchronous>, transform_indices = @transform_3, window_bounds = array<i64: 32, 4>}, {pipeline_mode = #tpu.pipeline_mode<synchronous>, transform_indices = @transform_4, window_bounds = array<i64: 1, 4>}, {pipeline_mode = #tpu.pipeline_mode<synchronous>, transform_indices = @transform_5, window_bounds = array<i64: 4, 32>}, {pipeline_mode = #tpu.pipeline_mode<synchronous>, transform_indices = @transform_6, window_bounds = array<i64: 1, 32>}, {pipeline_mode = #tpu.pipeline_mode<synchronous>, transform_indices = @transform_7, window_bounds = array<i64: 2, 32>}]} {
    %c0_i32 = arith.constant 0 : i32
    %0 = arith.cmpi eq, %arg0, %c0_i32 : i32
    %1 = arith.extui %0 : i1 to i32
    %c0_i32_0 = arith.constant 0 : i32
    %2 = arith.cmpi ne, %1, %c0_i32_0 : i32
    scf.if %2 {
      %cst_16 = arith.constant 0.000000e+00 : f32
      %16 = vector.broadcast %cst_16 : f32 to vector<2x32xf32>
      %c0_17 = arith.constant 0 : index
      %c0_18 = arith.constant 0 : index
      %17 = vector.load %arg9[%c0_17, %c0_18] : memref<2x32xf32, #tpu.memory_space<vmem>>, vector<2x32xf32>
      tpu.vector_store %arg9[%c0_17, %c0_18], %16 {strides = array<i32>} : memref<2x32xf32, #tpu.memory_space<vmem>>, vector<2x32xf32>,
      %cst_19 = arith.constant 0.000000e+00 : f32
      %18 = vector.broadcast %cst_19 : f32 to vector<2x32xf32>
      %c0_20 = arith.constant 0 : index
      %c0_21 = arith.constant 0 : index
      %19 = vector.load %arg10[%c0_20, %c0_21] : memref<2x32xf32, #tpu.memory_space<vmem>>, vector<2x32xf32>
      tpu.vector_store %arg10[%c0_20, %c0_21], %18 {strides = array<i32>} : memref<2x32xf32, #tpu.memory_space<vmem>>, vector<2x32xf32>,
    } else {
    }
    %c0 = arith.constant 0 : index
    %c0_1 = arith.constant 0 : index
    %3 = vector.load %arg9[%c0, %c0_1] : memref<2x32xf32, #tpu.memory_space<vmem>>, vector<2x32xf32>
    %c0_2 = arith.constant 0 : index
    %c0_3 = arith.constant 0 : index
    %c0_4 = arith.constant 0 : index
    %4 = vector.load %arg1[%c0_2, %c0_3, %c0_4] : memref<2x32x128xf32, #tpu.memory_space<vmem>>, vector<2x32x128xf32>
    %cst = arith.constant dense<0.000000e+00> : vector<2x32xf32>
    %5 = vector.multi_reduction <add>, %4, %cst [2] : vector<2x32x128xf32> to vector<2x32xf32>
    %6 = arith.addf %3, %5 : vector<2x32xf32>
    %c0_5 = arith.constant 0 : index
    %c0_6 = arith.constant 0 : index
    %7 = vector.load %arg9[%c0_5, %c0_6] : memref<2x32xf32, #tpu.memory_space<vmem>>, vector<2x32xf32>
    tpu.vector_store %arg9[%c0_5, %c0_6], %6 {strides = array<i32>} : memref<2x32xf32, #tpu.memory_space<vmem>>, vector<2x32xf32>,
    %c0_7 = arith.constant 0 : index
    %c0_8 = arith.constant 0 : index
    %8 = vector.load %arg10[%c0_7, %c0_8] : memref<2x32xf32, #tpu.memory_space<vmem>>, vector<2x32xf32>
    %c0_9 = arith.constant 0 : index
    %c0_10 = arith.constant 0 : index
    %c0_11 = arith.constant 0 : index
    %9 = vector.load %arg2[%c0_9, %c0_10, %c0_11] : memref<2x32x128xf32, #tpu.memory_space<vmem>>, vector<2x32x128xf32>
    %cst_12 = arith.constant dense<0.000000e+00> : vector<2x32xf32>
    %10 = vector.multi_reduction <add>, %9, %cst_12 [2] : vector<2x32x128xf32> to vector<2x32xf32>
    %11 = arith.addf %8, %10 : vector<2x32xf32>
    %c0_13 = arith.constant 0 : index
    %c0_14 = arith.constant 0 : index
    %12 = vector.load %arg10[%c0_13, %c0_14] : memref<2x32xf32, #tpu.memory_space<vmem>>, vector<2x32xf32>
    tpu.vector_store %arg10[%c0_13, %c0_14], %11 {strides = array<i32>} : memref<2x32xf32, #tpu.memory_space<vmem>>, vector<2x32xf32>,
    %c1_i32 = arith.constant 1 : i32
    %13 = arith.cmpi eq, %arg0, %c1_i32 : i32
    %14 = arith.extui %13 : i1 to i32
    %c0_i32_15 = arith.constant 0 : i32
    %15 = arith.cmpi ne, %14, %c0_i32_15 : i32
    scf.if %15 {
      %c0_16 = arith.constant 0 : index
      %c0_17 = arith.constant 0 : index
      %16 = vector.load %arg9[%c0_16, %c0_17] : memref<2x32xf32, #tpu.memory_space<vmem>>, vector<2x32xf32>
      %cst_18 = arith.constant 3.906250e-03 : f32
      %17 = vector.broadcast %cst_18 : f32 to vector<2x32xf32>
      %18 = arith.mulf %16, %17 : vector<2x32xf32>
      %c0_19 = arith.constant 0 : index
      %c0_20 = arith.constant 0 : index
      %19 = vector.load %arg10[%c0_19, %c0_20] : memref<2x32xf32, #tpu.memory_space<vmem>>, vector<2x32xf32>
      %cst_21 = arith.constant 3.906250e-03 : f32
      %20 = vector.broadcast %cst_21 : f32 to vector<2x32xf32>
      %21 = arith.mulf %19, %20 : vector<2x32xf32>
      %c0_22 = arith.constant 0 : index
      %c0_23 = arith.constant 0 : index
      %22 = vector.load %arg3[%c0_22, %c0_23] : memref<32x4xf32, #tpu.memory_space<vmem>>, vector<32x4xf32>
      %cst_24 = arith.constant dense<0.000000e+00> : vector<2x4xf32>
      %23 = tpu.matmul %18, %22, %cst_24 {dimension_numbers = #tpu.dot_dimension_numbers<[1], [0], [0], [1], [0, 0, 1, 1], [], []>} : vector<2x32xf32>, vector<32x4xf32>, vector<2x4xf32> -> vector<2x4xf32>
      %c0_25 = arith.constant 0 : index
      %c0_26 = arith.constant 0 : index
      %24 = vector.load %arg4[%c0_25, %c0_26] : memref<32x4xf32, #tpu.memory_space<vmem>>, vector<32x4xf32>
      %cst_27 = arith.constant dense<0.000000e+00> : vector<2x4xf32>
      %25 = tpu.matmul %21, %24, %cst_27 {dimension_numbers = #tpu.dot_dimension_numbers<[1], [0], [0], [1], [0, 0, 1, 1], [], []>} : vector<2x32xf32>, vector<32x4xf32>, vector<2x4xf32> -> vector<2x4xf32>
      %26 = arith.addf %23, %25 : vector<2x4xf32>
      %c0_28 = arith.constant 0 : index
      %c0_29 = arith.constant 0 : index
      %27 = vector.load %arg5[%c0_28, %c0_29] : memref<1x4xf32, #tpu.memory_space<vmem>>, vector<1x4xf32>
      %28 = vector.broadcast %27 : vector<1x4xf32> to vector<2x4xf32>
      %29 = arith.addf %26, %28 : vector<2x4xf32>
      %cst_30 = arith.constant 0.000000e+00 : f32
      %30 = vector.broadcast %cst_30 : f32 to vector<2x4xf32>
      %31 = arith.maximumf %29, %30 : vector<2x4xf32>
      %c0_31 = arith.constant 0 : index
      %c0_32 = arith.constant 0 : index
      %32 = vector.load %arg6[%c0_31, %c0_32] : memref<4x32xf32, #tpu.memory_space<vmem>>, vector<4x32xf32>
      %cst_33 = arith.constant dense<0.000000e+00> : vector<2x32xf32>
      %33 = tpu.matmul %31, %32, %cst_33 {dimension_numbers = #tpu.dot_dimension_numbers<[1], [0], [0], [1], [0, 0, 1, 1], [], []>} : vector<2x4xf32>, vector<4x32xf32>, vector<2x32xf32> -> vector<2x32xf32>
      %c0_34 = arith.constant 0 : index
      %c0_35 = arith.constant 0 : index
      %34 = vector.load %arg7[%c0_34, %c0_35] : memref<1x32xf32, #tpu.memory_space<vmem>>, vector<1x32xf32>
      %35 = vector.broadcast %34 : vector<1x32xf32> to vector<2x32xf32>
      %36 = arith.addf %33, %35 : vector<2x32xf32>
      %c0_36 = arith.constant 0 : index
      %c0_37 = arith.constant 0 : index
      %37 = vector.load %arg8[%c0_36, %c0_37] : memref<2x32xf32, #tpu.memory_space<vmem>>, vector<2x32xf32>
      tpu.vector_store %arg8[%c0_36, %c0_37], %36 {strides = array<i32>} : memref<2x32xf32, #tpu.memory_space<vmem>>, vector<2x32xf32>,
    } else {
    }
    return
  }
  func.func @transform_0(%arg0: i32) -> (i32, i32, i32) {
    %c0_i32 = arith.constant 0 : i32
    %c0_i32_0 = arith.constant 0 : i32
    %c0_i32_1 = arith.constant 0 : i32
    return %c0_i32, %c0_i32_0, %arg0 : i32, i32, i32
  }
  func.func @transform_1(%arg0: i32) -> (i32, i32, i32) {
    %c0_i32 = arith.constant 0 : i32
    %c0_i32_0 = arith.constant 0 : i32
    %c0_i32_1 = arith.constant 0 : i32
    return %c0_i32, %c0_i32_0, %arg0 : i32, i32, i32
  }
  func.func @transform_2(%arg0: i32) -> (i32, i32) {
    %c0_i32 = arith.constant 0 : i32
    %c0_i32_0 = arith.constant 0 : i32
    %c0_i32_1 = arith.constant 0 : i32
    return %c0_i32, %c0_i32_0 : i32, i32
  }
  func.func @transform_3(%arg0: i32) -> (i32, i32) {
    %c0_i32 = arith.constant 0 : i32
    %c0_i32_0 = arith.constant 0 : i32
    %c0_i32_1 = arith.constant 0 : i32
    return %c0_i32, %c0_i32_0 : i32, i32
  }
  func.func @transform_4(%arg0: i32) -> (i32, i32) {
    %c0_i32 = arith.constant 0 : i32
    %c0_i32_0 = arith.constant 0 : i32
    %c0_i32_1 = arith.constant 0 : i32
    return %c0_i32, %c0_i32_0 : i32, i32
  }
  func.func @transform_5(%arg0: i32) -> (i32, i32) {
    %c0_i32 = arith.constant 0 : i32
    %c0_i32_0 = arith.constant 0 : i32
    %c0_i32_1 = arith.constant 0 : i32
    return %c0_i32, %c0_i32_0 : i32, i32
  }
  func.func @transform_6(%arg0: i32) -> (i32, i32) {
    %c0_i32 = arith.constant 0 : i32
    %c0_i32_0 = arith.constant 0 : i32
    %c0_i32_1 = arith.constant 0 : i32
    return %c0_i32, %c0_i32_0 : i32, i32
  }
  func.func @transform_7(%arg0: i32) -> (i32, i32) {
    %c0_i32 = arith.constant 0 : i32
    %c0_i32_0 = arith.constant 0 : i32
    %c0_i32_1 = arith.constant 0 : i32
    return %c0_i32, %c0_i32_0 : i32, i32
  }
}

</mosaic_0001>

<llo_original>
// kernel: tpu_custom_call.1
$region0: #{tpu_custom_call.1}
  #allocation0 [shape = 'u32[]', space=smem, size = 0x4, offset = 0x4, fixed_abs, tag = 'smem constant byte address 0x4 - core index']
  #allocation1 [shape = 'u32[144,128]{1,0:T(1,128)}', space=vmem, size = 0x12000, scoped, tag = 'internal scratch']
  #allocation2 [shape = 'f32[2,32]{1,0:T(2,128)}', space=vmem, size = 0x400, scoped, tag = 'scratch operand']
  #allocation3 [shape = 'f32[2,32]{1,0:T(2,128)}', space=vmem, size = 0x400, scoped, tag = 'scratch operand']
  %s0 = inlined_call_operand.hbm [shape: f32[2,32,256], index: 0, kind: input, shape index: {}]
  %s1 = inlined_call_operand.hbm [shape: f32[2,32,256], index: 1, kind: input, shape index: {}]
  %s2 = inlined_call_operand.vmem [shape: f32[32,4], index: 2, kind: input, shape index: {}]
  %s3 = inlined_call_operand.vmem [shape: f32[32,4], index: 3, kind: input, shape index: {}]
  %s4 = inlined_call_operand.vmem [shape: f32[1,4], index: 4, kind: input, shape index: {}]
  %s5 = inlined_call_operand.vmem [shape: f32[4,32], index: 5, kind: input, shape index: {}]
  %s6 = inlined_call_operand.vmem [shape: f32[1,32], index: 6, kind: input, shape index: {}]
  %s7 = inlined_call_operand.hbm [shape: f32[2,32], index: 7, kind: output, shape index: {}]
  %s8 = sld [smem:[#allocation0]]
  $region77: #{tpu_custom_call.1} parent=0
    _
  %s10 = ssub.s32 1, %s8
  %s11 = scalar_select 0, %s10, %s8
  $region1: #{tpu_custom_call.1} parent=0
    #allocation4 [shape = 'u8[65536]{0}', space=vmem, size = 0x10000, scoped, tag = 'input window, operand 0']
    #allocation5 [shape = 's32[2]{0}', space=sflag, size = 0x8, scoped, tag = 'scoped memory for tpu_custom_call.1']
    #allocation6 [shape = 's32[2]{0}', space=sflag, size = 0x8, scoped, tag = 'scoped memory for tpu_custom_call.1']
    #allocation7 [shape = 'u8[65536]{0}', space=vmem, size = 0x10000, scoped, tag = 'input window, operand 1']
    #allocation8 [shape = 's32[2]{0}', space=sflag, size = 0x8, scoped, tag = 'scoped memory for tpu_custom_call.1']
    #allocation9 [shape = 'u8[1024]{0}', space=vmem, size = 0x400, scoped, tag = 'output window, operand 0, single buffered']
    %12 = vsyncpa [#allocation5], 0
    %s13 = scalar_lea.sflag [#allocation5], 1
    %14 = vsyncpa %s13, 0
    %15 = vsyncpa [#allocation8], 0
    %s16 = scalar_lea.sflag [#allocation8], 1
    %17 = vsyncpa %s16, 0
    %18 = vsyncpa [#allocation6], 0
    loop: start=0, step=1, limit=4
    $region2: #{tpu_custom_call.1} parent=1 // loop_pre_header
      _
    $region3: #{tpu_custom_call.1} parent=1 // loop_header
      %s20 = sphi 0, %s24
      %p21 = scmp.ge.s32.totalorder %s20, 4
      %s30 = sphi 0, %s32
      %s33 = sphi 0, %s30
      %s34 = sphi 0, %s33
      %s50 = sphi 0, %s34
      %s56 = sphi 0, %s58
      %s59 = sphi 0, %s56
      %s60 = sphi 0, %s59
      %s76 = sphi 0, %s60
      %s80 = sphi 0, %s80
      %s82 = sphi 0, %s80
      %s83 = sphi 0, %s82
      %s97 = sphi 0, %s83
      %s101 = sphi 0, %s101
      %s103 = sphi 0, %s101
      %s104 = sphi 0, %s103
      %s118 = sphi 0, %s104
      %s122 = sphi 0, %s122
      %s124 = sphi 0, %s122
      %s125 = sphi 0, %s124
      %s139 = sphi 0, %s125
      %s143 = sphi 0, %s143
      %s145 = sphi 0, %s143
      %s146 = sphi 0, %s145
      %s160 = sphi 0, %s146
      %s164 = sphi 0, %s164
      %s166 = sphi 0, %s164
      %s167 = sphi 0, %s166
      %s181 = sphi 0, %s167
      %s185 = sphi 0, %s185
      %s187 = sphi 0, %s185
      %s188 = sphi 0, %s187
      %s202 = sphi 0, %s188
    $region4: #{tpu_custom_call.1} parent=1 // loop_header_branch
      %23 = sbr.rel (%p21) target = $region8
    $region5: #{tpu_custom_call.1} parent=1 // loop_body
      %s25 = ssub.s32 %s20, 1
      %s26 = ssub.s32 %s20, 2
      %s27 = sadd.s32 %s20, 1
      %s28 = ssub.s32 %s20, %s27
      %p29 = scmp.eq.s32.totalorder %s28, 0
      %s31 = sadd.s32 %s30, 1
      %s32 = scalar_select %p29, %s30, %s31
      %p35 = pneg %p29
      %p36 = scmp.eq.s32.totalorder %s20, 1
      %p37 = por %p35, %p36
      %p38 = scmp.ne.s32.totalorder %s30, %s33
      %p39 = scmp.eq.s32.totalorder %s20, 0
      %p40 = por %p38, %p39
      %p41 = scmp.ne.s32.totalorder %s30, %s33
      %p42 = scmp.eq.s32.totalorder %s25, 1
      %p43 = por %p41, %p42
      %p44 = scmp.ne.s32.totalorder %s33, %s34
      %p45 = scmp.eq.s32.totalorder %s25, 0
      %p46 = por %p44, %p45
      %p47 = scmp.ne.s32.totalorder %s33, %s34
      %p48 = scmp.eq.s32.totalorder %s26, 1
      %p49 = por %p47, %p48
      %p51 = scmp.ne.s32.totalorder %s34, %s50
      %p52 = scmp.eq.s32.totalorder %s26, 0
      %p53 = por %p51, %p52
      %s54 = ssub.s32 %s20, %s27
      %p55 = scmp.eq.s32.totalorder %s54, 0
      %s57 = sadd.s32 %s56, 1
      %s58 = scalar_select %p55, %s56, %s57
      %p61 = pneg %p55
      %p62 = scmp.eq.s32.totalorder %s20, 1
      %p63 = por %p61, %p62
      %p64 = scmp.ne.s32.totalorder %s56, %s59
      %p65 = scmp.eq.s32.totalorder %s20, 0
      %p66 = por %p64, %p65
      %p67 = scmp.ne.s32.totalorder %s56, %s59
      %p68 = scmp.eq.s32.totalorder %s25, 1
      %p69 = por %p67, %p68
      %p70 = scmp.ne.s32.totalorder %s59, %s60
      %p71 = scmp.eq.s32.totalorder %s25, 0
      %p72 = por %p70, %p71
      %p73 = scmp.ne.s32.totalorder %s59, %s60
      %p74 = scmp.eq.s32.totalorder %s26, 1
      %p75 = por %p73, %p74
      %p77 = scmp.ne.s32.totalorder %s60, %s76
      %p78 = scmp.eq.s32.totalorder %s26, 0
      %p79 = por %p77, %p78
      %s81 = sadd.s32 %s80, 1
      %p84 = scmp.eq.s32.totalorder %s20, 1
      %p85 = scmp.ne.s32.totalorder %s80, %s82
      %p86 = scmp.eq.s32.totalorder %s20, 0
      %p87 = por %p85, %p86
      %p88 = scmp.ne.s32.totalorder %s80, %s82
      %p89 = scmp.eq.s32.totalorder %s25, 1
      %p90 = por %p88, %p89
      %p91 = scmp.ne.s32.totalorder %s82, %s83
      %p92 = scmp.eq.s32.totalorder %s25, 0
      %p93 = por %p91, %p92
      %p94 = scmp.ne.s32.totalorder %s82, %s83
      %p95 = scmp.eq.s32.totalorder %s26, 1
      %p96 = por %p94, %p95
      %p98 = scmp.ne.s32.totalorder %s83, %s97
      %p99 = scmp.eq.s32.totalorder %s26, 0
      %p100 = por %p98, %p99
      %s102 = sadd.s32 %s101, 1
      %p105 = scmp.eq.s32.totalorder %s20, 1
      %p106 = scmp.ne.s32.totalorder %s101, %s103
      %p107 = scmp.eq.s32.totalorder %s20, 0
      %p108 = por %p106, %p107
      %p109 = scmp.ne.s32.totalorder %s101, %s103
      %p110 = scmp.eq.s32.totalorder %s25, 1
      %p111 = por %p109, %p110
      %p112 = scmp.ne.s32.totalorder %s103, %s104
      %p113 = scmp.eq.s32.totalorder %s25, 0
      %p114 = por %p112, %p113
      %p115 = scmp.ne.s32.totalorder %s103, %s104
      %p116 = scmp.eq.s32.totalorder %s26, 1
      %p117 = por %p115, %p116
      %p119 = scmp.ne.s32.totalorder %s104, %s118
      %p120 = scmp.eq.s32.totalorder %s26, 0
      %p121 = por %p119, %p120
      %s123 = sadd.s32 %s122, 1
      %p126 = scmp.eq.s32.totalorder %s20, 1
      %p127 = scmp.ne.s32.totalorder %s122, %s124
      %p128 = scmp.eq.s32.totalorder %s20, 0
      %p129 = por %p127, %p128
      %p130 = scmp.ne.s32.totalorder %s122, %s124
      %p131 = scmp.eq.s32.totalorder %s25, 1
      %p132 = por %p130, %p131
      %p133 = scmp.ne.s32.totalorder %s124, %s125
      %p134 = scmp.eq.s32.totalorder %s25, 0
      %p135 = por %p133, %p134
      %p136 = scmp.ne.s32.totalorder %s124, %s125
      %p137 = scmp.eq.s32.totalorder %s26, 1
      %p138 = por %p136, %p137
      %p140 = scmp.ne.s32.totalorder %s125, %s139
      %p141 = scmp.eq.s32.totalorder %s26, 0
      %p142 = por %p140, %p141
      %s144 = sadd.s32 %s143, 1
      %p147 = scmp.eq.s32.totalorder %s20, 1
      %p148 = scmp.ne.s32.totalorder %s143, %s145
      %p149 = scmp.eq.s32.totalorder %s20, 0
      %p150 = por %p148, %p149
      %p151 = scmp.ne.s32.totalorder %s143, %s145
      %p152 = scmp.eq.s32.totalorder %s25, 1
      %p153 = por %p151, %p152
      %p154 = scmp.ne.s32.totalorder %s145, %s146
      %p155 = scmp.eq.s32.totalorder %s25, 0
      %p156 = por %p154, %p155
      %p157 = scmp.ne.s32.totalorder %s145, %s146
      %p158 = scmp.eq.s32.totalorder %s26, 1
      %p159 = por %p157, %p158
      %p161 = scmp.ne.s32.totalorder %s146, %s160
      %p162 = scmp.eq.s32.totalorder %s26, 0
      %p163 = por %p161, %p162
      %s165 = sadd.s32 %s164, 1
      %p168 = scmp.eq.s32.totalorder %s20, 1
      %p169 = scmp.ne.s32.totalorder %s164, %s166
      %p170 = scmp.eq.s32.totalorder %s20, 0
      %p171 = por %p169, %p170
      %p172 = scmp.ne.s32.totalorder %s164, %s166
      %p173 = scmp.eq.s32.totalorder %s25, 1
      %p174 = por %p172, %p173
      %p175 = scmp.ne.s32.totalorder %s166, %s167
      %p176 = scmp.eq.s32.totalorder %s25, 0
      %p177 = por %p175, %p176
      %p178 = scmp.ne.s32.totalorder %s166, %s167
      %p179 = scmp.eq.s32.totalorder %s26, 1
      %p180 = por %p178, %p179
      %p182 = scmp.ne.s32.totalorder %s167, %s181
      %p183 = scmp.eq.s32.totalorder %s26, 0
      %p184 = por %p182, %p183
      %s186 = sadd.s32 %s185, 1
      %p189 = scmp.eq.s32.totalorder %s20, 1
      %p190 = scmp.ne.s32.totalorder %s185, %s187
      %p191 = scmp.eq.s32.totalorder %s20, 0
      %p192 = por %p190, %p191
      %p193 = scmp.ne.s32.totalorder %s185, %s187
      %p194 = scmp.eq.s32.totalorder %s25, 1
      %p195 = por %p193, %p194
      %p196 = scmp.ne.s32.totalorder %s187, %s188
      %p197 = scmp.eq.s32.totalorder %s25, 0
      %p198 = por %p196, %p197
      %p199 = scmp.ne.s32.totalorder %s187, %s188
      %p200 = scmp.eq.s32.totalorder %s26, 1
      %p201 = por %p199, %p200
      %p203 = scmp.ne.s32.totalorder %s188, %s202
      %p204 = scmp.eq.s32.totalorder %s26, 0
      %p205 = por %p203, %p204
      %p206 = scmp.le.s32.totalorder 1, %s20
      %p207 = scmp.lt.s32.totalorder %s20, 3
      %p208 = pnand %p206, %p207
      %p209 = pneg %p208
      // Predicated region
      $region9: #{tpu_custom_call.1} parent=5 // pred_check
        _
      $region10: #{tpu_custom_call.1} parent=5 // pred_check_branch
        %211 = sbr.rel (%p208) target = $region12
      $region11: #{tpu_custom_call.1} parent=5 // pred_region
        %s212 = ssub.s32 %s20, 1
        // Predicated region
        $region13: #{tpu_custom_call.1} parent=11 // pred_check
          %p213 = pneg %p93
        $region14: #{tpu_custom_call.1} parent=11 // pred_check_branch
          %215 = sbr.rel (%p213) target = $region16
        $region15: #{tpu_custom_call.1} parent=11 // pred_region
          _
        $region16: #{tpu_custom_call.1} parent=11 // pred_fallthru
          _
        // Predicated region
        $region17: #{tpu_custom_call.1} parent=11 // pred_check
          %p216 = pneg %p114
        $region18: #{tpu_custom_call.1} parent=11 // pred_check_branch
          %218 = sbr.rel (%p216) target = $region20
        $region19: #{tpu_custom_call.1} parent=11 // pred_region
          _
        $region20: #{tpu_custom_call.1} parent=11 // pred_fallthru
          _
        // Predicated region
        $region21: #{tpu_custom_call.1} parent=11 // pred_check
          %p219 = pneg %p135
        $region22: #{tpu_custom_call.1} parent=11 // pred_check_branch
          %221 = sbr.rel (%p219) target = $region24
        $region23: #{tpu_custom_call.1} parent=11 // pred_region
          _
        $region24: #{tpu_custom_call.1} parent=11 // pred_fallthru
          _
        // Predicated region
        $region25: #{tpu_custom_call.1} parent=11 // pred_check
          %p222 = pneg %p156
        $region26: #{tpu_custom_call.1} parent=11 // pred_check_branch
          %224 = sbr.rel (%p222) target = $region28
        $region27: #{tpu_custom_call.1} parent=11 // pred_region
          _
        $region28: #{tpu_custom_call.1} parent=11 // pred_fallthru
          _
        // Predicated region
        $region29: #{tpu_custom_call.1} parent=11 // pred_check
          %p225 = pneg %p177
        $region30: #{tpu_custom_call.1} parent=11 // pred_check_branch
          %227 = sbr.rel (%p225) target = $region32
        $region31: #{tpu_custom_call.1} parent=11 // pred_region
          _
        $region32: #{tpu_custom_call.1} parent=11 // pred_fallthru
          _
      $region12: #{tpu_custom_call.1} parent=5 // pred_fallthru
        _
      %p228 = scmp.lt.s32.totalorder %s20, 2
      // Predicated region
      $region33: #{tpu_custom_call.1} parent=5 // pred_check
        %p229 = pneg %p228
      $region34: #{tpu_custom_call.1} parent=5 // pred_check_branch
        %231 = sbr.rel (%p229) target = $region36
      $region35: #{tpu_custom_call.1} parent=5 // pred_region
        // Predicated region
        $region37: #{tpu_custom_call.1} parent=35 // pred_check
          %p232 = pneg %p40
        $region38: #{tpu_custom_call.1} parent=35 // pred_check_branch
          %234 = sbr.rel (%p232) target = $region40
        $region39: #{tpu_custom_call.1} parent=35 // pred_region
          %s235 = sand.u32 %s30, 1
          %s236 = scalar_lea.sflag [#allocation5], %s235
          %s237 = sand.u32 %s30, 1
          %s238 = smul.addr %s237, 64
          %s239 = scalar_lea.vmem [#allocation4], %s238
          %s241 = ssub.s32 1024, 1024
          %242 = vsyncadd %s236, %s241
          %s243 = smul.addr %s20, 128
          %s244 = scalar_lea.hbm %s0, %s243
          %s245 = sshll.u32 %s239, 4
          %s246 = int_to_ptr.vmem [resolvable:$true] %s245
          %251 = dma.hbm_to_vmem [thread:$0]  %s244, 1024, %s246, %s236, 256, 128, 8
        $region40: #{tpu_custom_call.1} parent=35 // pred_fallthru
          _
        // Predicated region
        $region41: #{tpu_custom_call.1} parent=35 // pred_check
          %p252 = pneg %p66
        $region42: #{tpu_custom_call.1} parent=35 // pred_check_branch
          %254 = sbr.rel (%p252) target = $region44
        $region43: #{tpu_custom_call.1} parent=35 // pred_region
          %s255 = sand.u32 %s56, 1
          %s256 = scalar_lea.sflag [#allocation8], %s255
          %s257 = sand.u32 %s56, 1
          %s258 = smul.addr %s257, 64
          %s259 = scalar_lea.vmem [#allocation7], %s258
          %s261 = ssub.s32 1024, 1024
          %262 = vsyncadd %s256, %s261
          %s263 = smul.addr %s20, 128
          %s264 = scalar_lea.hbm %s1, %s263
          %s265 = sshll.u32 %s259, 4
          %s266 = int_to_ptr.vmem [resolvable:$true] %s265
          %271 = dma.hbm_to_vmem [thread:$0]  %s264, 1024, %s266, %s256, 256, 128, 8
        $region44: #{tpu_custom_call.1} parent=35 // pred_fallthru
          _
      $region36: #{tpu_custom_call.1} parent=5 // pred_fallthru
        _
      %p272 = scmp.le.s32.totalorder 1, %s20
      %p273 = scmp.lt.s32.totalorder %s20, 3
      %p274 = pnand %p272, %p273
      %p275 = pneg %p274
      // Predicated region
      $region45: #{tpu_custom_call.1} parent=5 // pred_check
        _
      $region46: #{tpu_custom_call.1} parent=5 // pred_check_branch
        %277 = sbr.rel (%p274) target = $region48
      $region47: #{tpu_custom_call.1} parent=5 // pred_region
        %s278 = ssub.s32 %s20, 1
        %s279 = sand.u32 %s33, 1
        %s280 = scalar_lea.sflag [#allocation5], %s279
        %s281 = sand.u32 %s33, 1
        %s282 = smul.addr %s281, 64
        %s283 = scalar_lea.vmem [#allocation4], %s282
        // Predicated region
        $region49: #{tpu_custom_call.1} parent=47 // pred_check
          %p284 = pneg %p46
        $region50: #{tpu_custom_call.1} parent=47 // pred_check_branch
          %286 = sbr.rel (%p284) target = $region52
        $region51: #{tpu_custom_call.1} parent=47 // pred_region
          %287 = dma.done %s280, 1024
        $region52: #{tpu_custom_call.1} parent=47 // pred_fallthru
          _
        %s288 = sand.u32 %s59, 1
        %s289 = scalar_lea.sflag [#allocation8], %s288
        %s290 = sand.u32 %s59, 1
        %s291 = smul.addr %s290, 64
        %s292 = scalar_lea.vmem [#allocation7], %s291
        // Predicated region
        $region53: #{tpu_custom_call.1} parent=47 // pred_check
          %p293 = pneg %p72
        $region54: #{tpu_custom_call.1} parent=47 // pred_check_branch
          %295 = sbr.rel (%p293) target = $region56
        $region55: #{tpu_custom_call.1} parent=47 // pred_region
          %296 = dma.done %s289, 1024
        $region56: #{tpu_custom_call.1} parent=47 // pred_fallthru
          _
        %s297 = sand.u32 %s33, 1
        %s298 = scalar_lea.sflag [#allocation5], %s297
        %s299 = sand.u32 %s33, 1
        %s300 = smul.addr %s299, 64
        %s301 = scalar_lea.vmem [#allocation4], %s300
        %p302 = pneg %p46
        %p303 = pneg %p43
        %s304 = sand.u32 %s59, 1
        %s305 = scalar_lea.sflag [#allocation8], %s304
        %s306 = sand.u32 %s59, 1
        %s307 = smul.addr %s306, 64
        %s308 = scalar_lea.vmem [#allocation7], %s307
        %p309 = pneg %p72
        %p310 = pneg %p69
        %p311 = pneg %p93
        %p312 = pneg %p90
        %p313 = pneg %p114
        %p314 = pneg %p111
        %p315 = pneg %p135
        %p316 = pneg %p132
        %p317 = pneg %p156
        %p318 = pneg %p153
        %p319 = pneg %p177
        %p320 = pneg %p174
        %p321 = pneg %p198
        %p322 = pneg %p195
        %p323 = scmp.eq.s32.totalorder %s25, 0
        // Predicated region
        $region57: #{tpu_custom_call.1} parent=47 // pred_check
          %p324 = pneg %p323
        $region58: #{tpu_custom_call.1} parent=47 // pred_check_branch
          %326 = sbr.rel (%p324) target = $region60
        $region59: #{tpu_custom_call.1} parent=47 // pred_region
          %vm327 = vcmask 254976
          %328 = vst.msk [vmem:[#allocation2] sm:$0x3] %vm327, 0.0
          %329 = vst.msk [vmem:[#allocation3] sm:$0x3] %vm327, 0.0
        $region60: #{tpu_custom_call.1} parent=47 // pred_fallthru
          _
        %v330 = vld [vmem:[#allocation2] sm:$0x3]
        %v331 = vld [vmem:[%s283] sm:$0xff]
        %v332 = vld [vmem:[%s283 + $0x8] sm:$0xff]
        %v333 = vld [vmem:[%s283 + $0x10] sm:$0xff]
        %v334 = vld [vmem:[%s283 + $0x18] sm:$0xff]
        %v335 = vld [vmem:[%s283 + $0x20] sm:$0xff]
        %v336 = vld [vmem:[%s283 + $0x28] sm:$0xff]
        %v337 = vld [vmem:[%s283 + $0x30] sm:$0xff]
        %v338 = vld [vmem:[%s283 + $0x38] sm:$0xff]
        %339 = vadd.xlane.f32.xlu0 %v331
        %v340 = vpop.xlane.xlu0 %339
        %341 = vadd.xlane.f32.xlu0 %v332
        %v342 = vpop.xlane.xlu0 %341
        %343 = vadd.xlane.f32.xlu0 %v333
        %v344 = vpop.xlane.xlu0 %343
        %345 = vadd.xlane.f32.xlu0 %v334
        %v346 = vpop.xlane.xlu0 %345
        %347 = vadd.xlane.f32.xlu0 %v335
        %v348 = vpop.xlane.xlu0 %347
        %349 = vadd.xlane.f32.xlu0 %v336
        %v350 = vpop.xlane.xlu0 %349
        %351 = vadd.xlane.f32.xlu0 %v337
        %v352 = vpop.xlane.xlu0 %351
        %353 = vadd.xlane.f32.xlu0 %v338
        %v354 = vpop.xlane.xlu0 %353
        %v363 = vlaneseq
        %v364 = vand.u32 %v363, 127
        %v365 = vlaneseq
        %v366 = vshrl.u32 %v365, 7
        %v367 = vsub.s32 %v364, %v366
        %v368 = vrot.slane %v340, %v367
        %v369 = vadd.s32 %v364, 4294967288
        %v370 = vlaneseq
        %v371 = vshrl.u32 %v370, 7
        %v372 = vsub.s32 %v369, %v371
        %v373 = vrot.slane %v342, %v372
        %vm374 = vcmask 130112
        %v375 = vsel %vm374, %v373, %v368
        %v376 = vadd.s32 %v364, 4294967280
        %v377 = vlaneseq
        %v378 = vshrl.u32 %v377, 7
        %v379 = vsub.s32 %v376, %v378
        %v380 = vrot.slane %v344, %v379
        %vm381 = vcmask 195712
        %v382 = vsel %vm381, %v380, %v375
        %v383 = vadd.s32 %v364, 4294967272
        %v384 = vlaneseq
        %v385 = vshrl.u32 %v384, 7
        %v386 = vsub.s32 %v383, %v385
        %v387 = vrot.slane %v346, %v386
        %vm388 = vcmask 261312
        %v389 = vsel %vm388, %v387, %v382
        %v390 = vlaneseq
        %v391 = vshrl.u32 %v390, 7
        %v392 = vsub.s32 %v364, %v391
        %v393 = vrot.slane %v348, %v392
        %v394 = vlaneseq
        %v395 = vshrl.u32 %v394, 7
        %v396 = vsub.s32 %v369, %v395
        %v397 = vrot.slane %v350, %v396
        %v398 = vsel %vm374, %v397, %v393
        %v399 = vlaneseq
        %v400 = vshrl.u32 %v399, 7
        %v401 = vsub.s32 %v376, %v400
        %v402 = vrot.slane %v352, %v401
        %v403 = vsel %vm381, %v402, %v398
        %v404 = vlaneseq
        %v405 = vshrl.u32 %v404, 7
        %v406 = vsub.s32 %v383, %v405
        %v407 = vrot.slane %v354, %v406
        %v408 = vsel %vm388, %v407, %v403
        %vm409 = vcmask 1041409
        %v410 = vsel %vm409, %v408, %v389
        %v412 = vadd.f32 %v330, %v410
        %vm413 = vcmask 254976
        %414 = vst.msk [vmem:[#allocation2] sm:$0x3] %vm413, %v412
        %v415 = vld [vmem:[#allocation3] sm:$0x3]
        %v416 = vld [vmem:[%s292] sm:$0xff]
        %v417 = vld [vmem:[%s292 + $0x8] sm:$0xff]
        %v418 = vld [vmem:[%s292 + $0x10] sm:$0xff]
        %v419 = vld [vmem:[%s292 + $0x18] sm:$0xff]
        %v420 = vld [vmem:[%s292 + $0x20] sm:$0xff]
        %v421 = vld [vmem:[%s292 + $0x28] sm:$0xff]
        %v422 = vld [vmem:[%s292 + $0x30] sm:$0xff]
        %v423 = vld [vmem:[%s292 + $0x38] sm:$0xff]
        %424 = vadd.xlane.f32.xlu0 %v416
        %v425 = vpop.xlane.xlu0 %424
        %426 = vadd.xlane.f32.xlu0 %v417
        %v427 = vpop.xlane.xlu0 %426
        %428 = vadd.xlane.f32.xlu0 %v418
        %v429 = vpop.xlane.xlu0 %428
        %430 = vadd.xlane.f32.xlu0 %v419
        %v431 = vpop.xlane.xlu0 %430
        %432 = vadd.xlane.f32.xlu0 %v420
        %v433 = vpop.xlane.xlu0 %432
        %434 = vadd.xlane.f32.xlu0 %v421
        %v435 = vpop.xlane.xlu0 %434
        %436 = vadd.xlane.f32.xlu0 %v422
        %v437 = vpop.xlane.xlu0 %436
        %438 = vadd.xlane.f32.xlu0 %v423
        %v439 = vpop.xlane.xlu0 %438
        %v448 = vlaneseq
        %v449 = vshrl.u32 %v448, 7
        %v450 = vsub.s32 %v364, %v449
        %v451 = vrot.slane %v425, %v450
        %v452 = vlaneseq
        %v453 = vshrl.u32 %v452, 7
        %v454 = vsub.s32 %v369, %v453
        %v455 = vrot.slane %v427, %v454
        %v456 = vsel %vm374, %v455, %v451
        %v457 = vlaneseq
        %v458 = vshrl.u32 %v457, 7
        %v459 = vsub.s32 %v376, %v458
        %v460 = vrot.slane %v429, %v459
        %v461 = vsel %vm381, %v460, %v456
        %v462 = vlaneseq
        %v463 = vshrl.u32 %v462, 7
        %v464 = vsub.s32 %v383, %v463
        %v465 = vrot.slane %v431, %v464
        %v466 = vsel %vm388, %v465, %v461
        %v467 = vlaneseq
        %v468 = vshrl.u32 %v467, 7
        %v469 = vsub.s32 %v364, %v468
        %v470 = vrot.slane %v433, %v469
        %v471 = vlaneseq
        %v472 = vshrl.u32 %v471, 7
        %v473 = vsub.s32 %v369, %v472
        %v474 = vrot.slane %v435, %v473
        %v475 = vsel %vm374, %v474, %v470
        %v476 = vlaneseq
        %v477 = vshrl.u32 %v476, 7
        %v478 = vsub.s32 %v376, %v477
        %v479 = vrot.slane %v437, %v478
        %v480 = vsel %vm381, %v479, %v475
        %v481 = vlaneseq
        %v482 = vshrl.u32 %v481, 7
        %v483 = vsub.s32 %v383, %v482
        %v484 = vrot.slane %v439, %v483
        %v485 = vsel %vm388, %v484, %v480
        %v486 = vsel %vm409, %v485, %v466
        %v488 = vadd.f32 %v415, %v486
        %489 = vst.msk [vmem:[#allocation3] sm:$0x3] %vm413, %v488
        %p490 = scmp.eq.s32.totalorder %s25, 1
        // Predicated region
        $region61: #{tpu_custom_call.1} parent=47 // pred_check
          %p491 = pneg %p490
        $region62: #{tpu_custom_call.1} parent=47 // pred_check_branch
          %493 = sbr.rel (%p491) target = $region64
        $region63: #{tpu_custom_call.1} parent=47 // pred_region
          %v494 = vld [vmem:[#allocation2] sm:$0x3]
          %v495 = vmul.f32 %v494, 0.00390625
          %v496 = vld [vmem:[#allocation3] sm:$0x3]
          %v497 = vmul.f32 %v496, 0.00390625
          %v498 = vld [vmem:[%s2] sm:$0xff]
          %v499 = vld [vmem:[%s2 + $0x8] sm:$0xff]
          %v500 = vld [vmem:[%s2 + $0x10] sm:$0xff]
          %v501 = vld [vmem:[%s2 + $0x18] sm:$0xff]
          %v502 = vld [vmem:[%s3] sm:$0xff]
          %v503 = vld [vmem:[%s3 + $0x8] sm:$0xff]
          %v504 = vld [vmem:[%s3 + $0x10] sm:$0xff]
          %v505 = vld [vmem:[%s3 + $0x18] sm:$0xff]
          %vm506 = vcmask 261120
          %v508 = vsel %vm506, %v497, 0
          %510 = vmatprep.subr.mxu0 0.0
          %511 = vmatpush1.msra.mxu0 %v502
          %512 = vmatprep.subr.mxu0 0.0
          %513 = vmatpush1.msra.mxu0 %v503
          %514 = vmatprep.subr.mxu0 0.0
          %515 = vmatpush1.msra.mxu0 %v504
          %516 = vmatprep.subr.mxu0 0.0
          %517 = vmatpush1.msra.mxu0 %v505
          %518 = vmatprep.subr.mxu0 0.0
          %519 = vmatpush1.msra.mxu0 0.0
          %520 = vmatprep.subr.mxu0 0.0
          %521 = vmatpush1.msra.mxu0 0.0
          %522 = vmatprep.subr.mxu0 0.0
          %523 = vmatpush1.msra.mxu0 0.0
          %524 = vmatprep.subr.mxu0 0.0
          %525 = vmatpush1.msra.mxu0 0.0
          %526 = vmatprep.subr.mxu0 0.0
          %527 = vmatpush1.msra.mxu0 0.0
          %528 = vmatprep.subr.mxu0 0.0
          %529 = vmatpush1.msra.mxu0 0.0
          %530 = vmatprep.subr.mxu0 0.0
          %531 = vmatpush1.msra.mxu0 0.0
          %532 = vmatprep.subr.mxu0 0.0
          %533 = vmatpush1.msra.mxu0 0.0
          %534 = vmatprep.subr.mxu0 0.0
          %535 = vmatpush1.msra.mxu0 0.0
          %536 = vmatprep.subr.mxu0 0.0
          %537 = vmatpush1.msra.mxu0 0.0
          %538 = vmatprep.subr.mxu0 0.0
          %539 = vmatpush1.msra.mxu0 0.0
          %540 = vmatprep.subr.mxu0 0.0
          %541 = vmatpush1.msra.mxu0 0.0
          %542 = vmatprep.subr.mxu0 0.0
          %543 = vmatpush1.msra.mxu0 0.0
          %544 = vmatprep.subr.mxu0 0.0
          %545 = vmatpush1.msra.mxu0 0.0
          %546 = vmatprep.subr.mxu0 0.0
          %547 = vmatpush1.msra.mxu0 0.0
          %548 = vmatprep.subr.mxu0 0.0
          %549 = vmatpush1.msra.mxu0 0.0
          %550 = vmatprep.subr.mxu0 0.0
          %551 = vmatpush1.msra.mxu0 0.0
          %552 = vmatprep.subr.mxu0 0.0
          %553 = vmatpush1.msra.mxu0 0.0
          %554 = vmatprep.subr.mxu0 0.0
          %555 = vmatpush1.msra.mxu0 0.0
          %556 = vmatprep.subr.mxu0 0.0
          %557 = vmatpush1.msra.mxu0 0.0
          %558 = vmatprep.subr.mxu0 0.0
          %559 = vmatpush1.msra.mxu0 0.0
          %560 = vmatprep.subr.mxu0 0.0
          %561 = vmatpush1.msra.mxu0 0.0
          %562 = vmatprep.subr.mxu0 0.0
          %563 = vmatpush1.msra.mxu0 0.0
          %564 = vmatprep.subr.mxu0 0.0
          %565 = vmatpush1.msra.mxu0 0.0
          %566 = vmatprep.subr.mxu0 0.0
          %567 = vmatpush1.msra.mxu0 0.0
          %568 = vmatprep.subr.mxu0 0.0
          %569 = vmatpush1.msra.mxu0 0.0
          %570 = vmatprep.subr.mxu0 0.0
          %571 = vmatpush1.msra.mxu0 0.0
          %572 = vmatprep.subr.mxu0 0.0
          %573 = vmatpush1.msra.mxu0 0.0
          %574 = vmatprep.mubr.f32.mxu0 0.0
          %575 = vmatmul.mubr.f32.gmra.mrb[0].mxu0 %v508
          %v576 = vpop.f32.mrb[0].mxu0
          %v577 = vadd.f32 0.0, %v576
          %v578 = vpop.f32.mrb[0].mxu0
          %579 = vdwg.mxu0
          %v581 = vsel %vm506, %v495, 0
          %583 = vmatprep.subr.mxu0 0.0
          %584 = vmatpush1.msra.mxu0 %v498
          %585 = vmatprep.subr.mxu0 0.0
          %586 = vmatpush1.msra.mxu0 %v499
          %587 = vmatprep.subr.mxu0 0.0
          %588 = vmatpush1.msra.mxu0 %v500
          %589 = vmatprep.subr.mxu0 0.0
          %590 = vmatpush1.msra.mxu0 %v501
          %591 = vmatprep.subr.mxu0 0.0
          %592 = vmatpush1.msra.mxu0 0.0
          %593 = vmatprep.subr.mxu0 0.0
          %594 = vmatpush1.msra.mxu0 0.0
          %595 = vmatprep.subr.mxu0 0.0
          %596 = vmatpush1.msra.mxu0 0.0
          %597 = vmatprep.subr.mxu0 0.0
          %598 = vmatpush1.msra.mxu0 0.0
          %599 = vmatprep.subr.mxu0 0.0
          %600 = vmatpush1.msra.mxu0 0.0
          %601 = vmatprep.subr.mxu0 0.0
          %602 = vmatpush1.msra.mxu0 0.0
          %603 = vmatprep.subr.mxu0 0.0
          %604 = vmatpush1.msra.mxu0 0.0
          %605 = vmatprep.subr.mxu0 0.0
          %606 = vmatpush1.msra.mxu0 0.0
          %607 = vmatprep.subr.mxu0 0.0
          %608 = vmatpush1.msra.mxu0 0.0
          %609 = vmatprep.subr.mxu0 0.0
          %610 = vmatpush1.msra.mxu0 0.0
          %611 = vmatprep.subr.mxu0 0.0
          %612 = vmatpush1.msra.mxu0 0.0
          %613 = vmatprep.subr.mxu0 0.0
          %614 = vmatpush1.msra.mxu0 0.0
          %615 = vmatprep.subr.mxu0 0.0
          %616 = vmatpush1.msra.mxu0 0.0
          %617 = vmatprep.subr.mxu0 0.0
          %618 = vmatpush1.msra.mxu0 0.0
          %619 = vmatprep.subr.mxu0 0.0
          %620 = vmatpush1.msra.mxu0 0.0
          %621 = vmatprep.subr.mxu0 0.0
          %622 = vmatpush1.msra.mxu0 0.0
          %623 = vmatprep.subr.mxu0 0.0
          %624 = vmatpush1.msra.mxu0 0.0
          %625 = vmatprep.subr.mxu0 0.0
          %626 = vmatpush1.msra.mxu0 0.0
          %627 = vmatprep.subr.mxu0 0.0
          %628 = vmatpush1.msra.mxu0 0.0
          %629 = vmatprep.subr.mxu0 0.0
          %630 = vmatpush1.msra.mxu0 0.0
          %631 = vmatprep.subr.mxu0 0.0
          %632 = vmatpush1.msra.mxu0 0.0
          %633 = vmatprep.subr.mxu0 0.0
          %634 = vmatpush1.msra.mxu0 0.0
          %635 = vmatprep.subr.mxu0 0.0
          %636 = vmatpush1.msra.mxu0 0.0
          %637 = vmatprep.subr.mxu0 0.0
          %638 = vmatpush1.msra.mxu0 0.0
          %639 = vmatprep.subr.mxu0 0.0
          %640 = vmatpush1.msra.mxu0 0.0
          %641 = vmatprep.subr.mxu0 0.0
          %642 = vmatpush1.msra.mxu0 0.0
          %643 = vmatprep.subr.mxu0 0.0
          %644 = vmatpush1.msra.mxu0 0.0
          %645 = vmatprep.subr.mxu0 0.0
          %646 = vmatpush1.msra.mxu0 0.0
          %647 = vmatprep.mubr.f32.mxu0 0.0
          %648 = vmatmul.mubr.f32.gmra.mrb[0].mxu0 %v581
          %v649 = vpop.f32.mrb[0].mxu0
          %v650 = vadd.f32 %v577, %v649
          %v651 = vpop.f32.mrb[0].mxu0
          %652 = vdwg.mxu0
          %v653 = vld [vmem:[%s4] sm:$0x1]
          %v655 = vlaneseq
          %v656 = vshrl.u32 %v655, 7
          %v657 = vsub.s32 0, %v656
          %v658 = vrot.slane %v653, %v657
          %v660 = vadd.f32 %v650, %v658
          %v661 = vmax.f32 %v660, 0.0
          %v662 = vld [vmem:[%s5] sm:$0xf]
          %v663 = vld [vmem:[%s6] sm:$0x1]
          %v665 = vlaneseq
          %v666 = vshrl.u32 %v665, 7
          %v667 = vsub.s32 0, %v666
          %v668 = vrot.slane %v663, %v667
          %vm670 = vcmask 31744
          %v672 = vsel %vm670, %v661, 0
          %vm674 = vcmask 1043456
          %v676 = vsel %vm674, %v662, 0
          %678 = vmatprep.subr.mxu0 0.0
          %679 = vmatpush1.msra.mxu0 %v676
          %680 = vmatprep.subr.mxu0 0.0
          %681 = vmatpush1.msra.mxu0 0.0
          %682 = vmatprep.subr.mxu0 0.0
          %683 = vmatpush1.msra.mxu0 0.0
          %684 = vmatprep.subr.mxu0 0.0
          %685 = vmatpush1.msra.mxu0 0.0
          %686 = vmatprep.subr.mxu0 0.0
          %687 = vmatpush1.msra.mxu0 0.0
          %688 = vmatprep.subr.mxu0 0.0
          %689 = vmatpush1.msra.mxu0 0.0
          %690 = vmatprep.subr.mxu0 0.0
          %691 = vmatpush1.msra.mxu0 0.0
          %692 = vmatprep.subr.mxu0 0.0
          %693 = vmatpush1.msra.mxu0 0.0
          %694 = vmatprep.subr.mxu0 0.0
          %695 = vmatpush1.msra.mxu0 0.0
          %696 = vmatprep.subr.mxu0 0.0
          %697 = vmatpush1.msra.mxu0 0.0
          %698 = vmatprep.subr.mxu0 0.0
          %699 = vmatpush1.msra.mxu0 0.0
          %700 = vmatprep.subr.mxu0 0.0
          %701 = vmatpush1.msra.mxu0 0.0
          %702 = vmatprep.subr.mxu0 0.0
          %703 = vmatpush1.msra.mxu0 0.0
          %704 = vmatprep.subr.mxu0 0.0
          %705 = vmatpush1.msra.mxu0 0.0
          %706 = vmatprep.subr.mxu0 0.0
          %707 = vmatpush1.msra.mxu0 0.0
          %708 = vmatprep.subr.mxu0 0.0
          %709 = vmatpush1.msra.mxu0 0.0
          %710 = vmatprep.subr.mxu0 0.0
          %711 = vmatpush1.msra.mxu0 0.0
          %712 = vmatprep.subr.mxu0 0.0
          %713 = vmatpush1.msra.mxu0 0.0
          %714 = vmatprep.subr.mxu0 0.0
          %715 = vmatpush1.msra.mxu0 0.0
          %716 = vmatprep.subr.mxu0 0.0
          %717 = vmatpush1.msra.mxu0 0.0
          %718 = vmatprep.subr.mxu0 0.0
          %719 = vmatpush1.msra.mxu0 0.0
          %720 = vmatprep.subr.mxu0 0.0
          %721 = vmatpush1.msra.mxu0 0.0
          %722 = vmatprep.subr.mxu0 0.0
          %723 = vmatpush1.msra.mxu0 0.0
          %724 = vmatprep.subr.mxu0 0.0
          %725 = vmatpush1.msra.mxu0 0.0
          %726 = vmatprep.subr.mxu0 0.0
          %727 = vmatpush1.msra.mxu0 0.0
          %728 = vmatprep.subr.mxu0 0.0
          %729 = vmatpush1.msra.mxu0 0.0
          %730 = vmatprep.subr.mxu0 0.0
          %731 = vmatpush1.msra.mxu0 0.0
          %732 = vmatprep.subr.mxu0 0.0
          %733 = vmatpush1.msra.mxu0 0.0
          %734 = vmatprep.subr.mxu0 0.0
          %735 = vmatpush1.msra.mxu0 0.0
          %736 = vmatprep.subr.mxu0 0.0
          %737 = vmatpush1.msra.mxu0 0.0
          %738 = vmatprep.subr.mxu0 0.0
          %739 = vmatpush1.msra.mxu0 0.0
          %740 = vmatprep.subr.mxu0 0.0
          %741 = vmatpush1.msra.mxu0 0.0
          %742 = vmatprep.mubr.f32.mxu0 0.0
          %743 = vmatmul.mubr.f32.gmra.mrb[0].mxu0 %v672
          %v744 = vpop.f32.mrb[0].mxu0
          %v745 = vadd.f32 %v668, %v744
          %v746 = vpop.f32.mrb[0].mxu0
          %747 = vdwg.mxu0
          %748 = vst.msk [vmem:[#allocation9] sm:$0x3] %vm413, %v745
        $region64: #{tpu_custom_call.1} parent=47 // pred_fallthru
          _
        // Predicated region
        $region65: #{tpu_custom_call.1} parent=47 // pred_check
          %p749 = pneg %p195
        $region66: #{tpu_custom_call.1} parent=47 // pred_check_branch
          %751 = sbr.rel (%p749) target = $region68
        $region67: #{tpu_custom_call.1} parent=47 // pred_region
          %s753 = ssub.s32 32, 32
          %754 = vsyncadd [#allocation6], %s753
          %s756 = sshll.u32 [#allocation9], 4
          %s757 = int_to_ptr.vmem [resolvable:$true] %s756
          %759 = dma.vmem_to_hbm [thread:$0]  %s757, 32, %s7, [#allocation6]
        $region68: #{tpu_custom_call.1} parent=47 // pred_fallthru
          _
        // Predicated region
        $region69: #{tpu_custom_call.1} parent=47 // pred_check
          %p760 = pneg %p195
        $region70: #{tpu_custom_call.1} parent=47 // pred_check_branch
          %762 = sbr.rel (%p760) target = $region72
        $region71: #{tpu_custom_call.1} parent=47 // pred_region
          %763 = dma.done [#allocation6], 32
        $region72: #{tpu_custom_call.1} parent=47 // pred_fallthru
          _
      $region48: #{tpu_custom_call.1} parent=5 // pred_fallthru
        _
      %p764 = scmp.le.s32.totalorder 2, %s20
      // Predicated region
      $region73: #{tpu_custom_call.1} parent=5 // pred_check
        %p765 = pneg %p764
      $region74: #{tpu_custom_call.1} parent=5 // pred_check_branch
        %767 = sbr.rel (%p765) target = $region76
      $region75: #{tpu_custom_call.1} parent=5 // pred_region
        %s768 = ssub.s32 %s20, 2
      $region76: #{tpu_custom_call.1} parent=5 // pred_fallthru
        _
    $region6: #{tpu_custom_call.1} parent=1 // loop_footer
      %s24 = sadd.s32 1, %s20
    $region7: #{tpu_custom_call.1} parent=1 // loop_footer_branch
      %19 = sbr.rel target = $region3
    $region8: #{tpu_custom_call.1} parent=1 // loop_exit
      _
    %769 = vsyncpa [#allocation5], 1
    %s770 = scalar_lea.sflag [#allocation5], 1
    %771 = vsyncpa %s770, 1
    %772 = vsyncpa [#allocation8], 1
    %s773 = scalar_lea.sflag [#allocation8], 1
    %774 = vsyncpa %s773, 1
    %775 = vsyncpa [#allocation6], 1
    %s776 = scalar_lea.sflag [#allocation6], 1
    %777 = vsyncpa %s776, 1

</llo_original>
